<compile_context>
chip_gen: v5e
topology: v5e:2x2
jax: 0.10.0
libtpu: 0.0.40
codegen_flags: <defaults>
</compile_context>

<pallas_src>
import numpy as np
import jax
import jax.numpy as jnp
from jax.experimental import pallas as pl
from jax.experimental.pallas import tpu as pltpu


# ----------------------------------------------------------------------------
# Kernel 1: 1x1 convolution (bias=False) on the low-resolution map.
#   x_ref: (1, Cin, Hl*Wl)   w_ref: (Cout, Cin)   o_ref: (1, Cout, Hl*Wl)
# TODO(synk): tile Cin / Hl*Wl for very large low-res maps; decoder sizes fit.
# ----------------------------------------------------------------------------
def _conv1x1_kernel(x_ref, w_ref, o_ref):
    y = jnp.dot(w_ref[...].astype(jnp.float32),
                x_ref[0].astype(jnp.float32),
                preferred_element_type=jnp.float32)
    o_ref[0] = y.astype(o_ref.dtype)


# ----------------------------------------------------------------------------
# Kernel 2: separable bilinear upsample of the conv result + channel concat.
#   y_ref : (1, Cout, Hl, Wl)   conv output (full low-res map, 1 DMA / image)
#   a_ref : (TH, Hl)            H-interp rows for this output-row tile
#   bt_ref: (Wl, Wh)            W-interp matrix (transposed), full
#   xh_ref: (1, Ch, TH, Wh)     high-res passthrough rows
#   o_ref : (1, Cout+Ch, TH, Wh)
# The two interpolation matmuls are tiny (low-res contraction depths), so they
# are simply recomputed per tile -- no cross-iteration scratch, which keeps
# the grid safe to shard across cores with "parallel" semantics.
# ----------------------------------------------------------------------------
def _upsample_concat_kernel(y_ref, a_ref, bt_ref, xh_ref, o_ref):
    cout, hl, wl = y_ref.shape[1:]
    th = a_ref.shape[0]
    wh = bt_ref.shape[1]

    y = y_ref[0].astype(jnp.float32)                          # (Cout, Hl, Wl)
    # Height interpolation, batched over channels (A tile is a few KB).
    a_b = jnp.broadcast_to(a_ref[...][None], (cout, th, hl))
    zh = jnp.einsum('cih,chl->cil', a_b, y,
                    preferred_element_type=jnp.float32)       # (Cout, TH, Wl)
    # Width interpolation as one lane-contraction matmul; TH % 8 == 0 keeps
    # the leading-dim merge/split layout-trivial.
    up = jnp.dot(zh.reshape(cout * th, wl), bt_ref[...],
                 preferred_element_type=jnp.float32)          # (Cout*TH, Wh)
    up = up.reshape(cout, th, wh)

    # Channel concat: channels are a major dim of the block, so both slab
    # writes are whole-tile (unmasked) regardless of cout.
    o_ref[0, :cout] = up.astype(o_ref.dtype)
    o_ref[0, cout:] = xh_ref[0]


# ----------------------------------------------------------------------------
# Host-side helpers
# ----------------------------------------------------------------------------
def _interp_matrix(out_size, in_size, align_corners=False):
    """(out_size, in_size) 1-D linear interpolation matrix.

    align_corners=False matches modern PyTorch F.upsample/interpolate;
    align_corners=True matches the pre-0.4.1 behaviour (flag per review)."""
    if in_size == 1:
        return np.ones((out_size, 1), np.float32)
    if align_corners:
        src = np.arange(out_size, dtype=np.float64) * (in_size - 1) / max(out_size - 1, 1)
    else:
        src = (np.arange(out_size, dtype=np.float64) + 0.5) * (in_size / out_size) - 0.5
        src = np.clip(src, 0.0, in_size - 1.0)
    i0 = np.clip(np.floor(src).astype(np.int64), 0, in_size - 2)
    frac = (src - i0).astype(np.float32)
    m = np.zeros((out_size, in_size), np.float32)
    m[np.arange(out_size), i0] += 1.0 - frac
    m[np.arange(out_size), i0 + 1] += frac
    return m


def _pick_row_tile(hh, per_row_bytes, budget_bytes=8 << 20):
    """Largest multiple-of-8 divisor of hh whose double-buffered row working
    set fits `budget_bytes`; prefer >=2 row tiles so the 'parallel' tile axis
    has work for both v7x TensorCores even at batch 1."""
    if hh % 8 != 0:
        return hh                       # toy / odd sizes: one full-height tile
    divs = [t for t in range(8, hh + 1, 8) if hh % t == 0]
    fitting = [t for t in divs if t * per_row_bytes <= budget_bytes] or [8]
    tiled = [t for t in fitting if hh // t >= 2]
    return max(tiled) if tiled else max(fitting)


def multi_resolution_fuse(input_low, input_high, w, *, align_corners=False):
    """input_low: (N,Cin,Hl,Wl)  input_high: (N,Ch,Hh,Wh)  w: (Cout,Cin).
    Returns cat([bilinear_up(conv1x1(input_low), (Hh,Wh)), input_high], dim=1)
    in NCHW, shape (N, Cout+Ch, Hh, Wh)."""
    n, cin, hl, wl = input_low.shape
    nh, ch, hh, wh = input_high.shape
    cout = w.shape[0]
    assert nh == n and w.shape[1] == cin
    ctot = cout + ch
    dtype = input_high.dtype
    isz = jnp.dtype(dtype).itemsize

    # ---- 1x1 conv on the low-res map (tiny; its own Pallas kernel) ---------
    hw_l = hl * wl
    y_flat = pl.pallas_call(
        _conv1x1_kernel,
        out_shape=jax.ShapeDtypeStruct((n, cout, hw_l), dtype),
        grid=(n,),
        in_specs=[pl.BlockSpec((1, cin, hw_l), lambda i: (i, 0, 0)),
                  pl.BlockSpec((cout, cin), lambda i: (0, 0))],
        out_specs=pl.BlockSpec((1, cout, hw_l), lambda i: (i, 0, 0)),
        compiler_params=pltpu.CompilerParams(
            dimension_semantics=("parallel",)),
        cost_estimate=pl.CostEstimate(
            flops=int(2 * n * cout * cin * hw_l),
            transcendentals=0,
            bytes_accessed=int(isz * n * (cin + cout) * hw_l + 4 * cout * cin)),
    )(input_low.reshape(n, cin, hw_l), w)
    y4 = y_flat.reshape(n, cout, hl, wl)

    # ---- separable bilinear interpolation matrices (a few KB, f32) ---------
    a = jnp.asarray(_interp_matrix(hh, hl, align_corners))           # (Hh, Hl)
    bt = jnp.asarray(_interp_matrix(wh, wl, align_corners).T)        # (Wl, Wh)

    # ---- row-tile size & explicit VMEM budget -------------------------------
    per_row = 2 * (ch + ctot) * wh * isz + 4 * cout * wh    # pipelined rows + temp
    th = _pick_row_tile(hh, per_row)
    n_t = hh // th

    blocks = (cout * hl * wl * isz + th * hl * 4 + wl * wh * 4
              + ch * th * wh * isz + ctot * th * wh * isz)
    temps = 4 * cout * (hl * wl + th * hl + th * wl + 2 * th * wh)
    vmem_limit = int(min(64 << 20, max(32 << 20, 2 * (2 * blocks + temps))))

    out = pl.pallas_call(
        _upsample_concat_kernel,
        out_shape=jax.ShapeDtypeStruct((n, ctot, hh, wh), dtype),
        grid=(n, n_t),
        in_specs=[
            pl.BlockSpec((1, cout, hl, wl), lambda i, t: (i, 0, 0, 0)),
            pl.BlockSpec((th, hl), lambda i, t: (t, 0)),
            pl.BlockSpec((wl, wh), lambda i, t: (0, 0)),
            pl.BlockSpec((1, ch, th, wh), lambda i, t: (i, 0, t, 0)),
        ],
        out_specs=pl.BlockSpec((1, ctot, th, wh), lambda i, t: (i, 0, t, 0)),
        compiler_params=pltpu.CompilerParams(
            dimension_semantics=("parallel", "parallel"),
            vmem_limit_bytes=vmem_limit),
        cost_estimate=pl.CostEstimate(
            flops=int(2 * n * cout * hh * wl * (hl + wh)),
            transcendentals=0,
            bytes_accessed=int(isz * n * (cout * hl * wl + ch * hh * wh
                                          + ctot * hh * wh)
                               + 4 * (hh * hl + wl * wh))),
    )(y4, a, bt, input_high)
    return out


# ----------------------------------------------------------------------------
# Pure-JAX reference (same math, no Pallas) for correctness checking
# ----------------------------------------------------------------------------
def multi_resolution_fuse_ref(input_low, input_high, w, *, align_corners=False):
    _, _, hl, wl = input_low.shape
    _, _, hh, wh = input_high.shape
    a = jnp.asarray(_interp_matrix(hh, hl, align_corners))           # (Hh, Hl)
    b = jnp.asarray(_interp_matrix(wh, wl, align_corners))           # (Wh, Wl)
    y = jnp.einsum('oc,nchw->nohw', w, input_low)                    # 1x1 conv
    up = jnp.einsum('ph,qv,nohv->nopq', a, b, y)                     # bilinear
    return jnp.concatenate([up, input_high], axis=1)


# ----------------------------------------------------------------------------
if __name__ == "__main__":
    N, Cin, Hl, Wl = 2, 4, 8, 8        # low-resolution input
    Cout, Hh, Wh = 8, 16, 16           # conv output channels, high-res size
    Ch = 8                             # high-resolution input channels

    key = jax.random.PRNGKey(0)
    k1, k2, k3 = jax.random.split(key, 3)
    input_low = jax.random.normal(k1, (N, Cin, Hl, Wl), dtype=jnp.float32)
    input_high = jax.random.normal(k2, (N, Ch, Hh, Wh), dtype=jnp.float32)
    w = (0.1 * jax.random.normal(k3, (Cout, Cin))).astype(jnp.float32)

    out = jax.block_until_ready(
        jax.jit(multi_resolution_fuse)(input_low, input_high, w))
    assert out.shape == (N, Cout + Ch, Hh, Wh), out.shape

    ref = jax.block_until_ready(
        jax.jit(multi_resolution_fuse_ref)(input_low, input_high, w))
    np.testing.assert_allclose(np.asarray(out), np.asarray(ref),
                               rtol=1e-4, atol=1e-4)

    print("KERNEL_OK")
</pallas_src>

<mosaic_0001>
module attributes {stable_mosaic.version = 11 : i64} {
  func.func @_conv1x1_kernel(%arg0: i32, %arg1: memref<1x4x64xf32, #tpu.memory_space<vmem>>, %arg2: memref<8x4xf32, #tpu.memory_space<vmem>>, %arg3: memref<1x8x64xf32, #tpu.memory_space<vmem>>) attributes {dimension_semantics = [#tpu.dimension_semantics<parallel>], iteration_bounds = array<i64: 2>, scalar_prefetch = 0 : i64, scratch_operands = 0 : i64, tpu.core_type = #tpu.core_type<tc>, window_params = [{transform_indices = @transform_0, window_bounds = array<i64: 1, 4, 64>}, {pipeline_mode = #tpu.pipeline_mode<synchronous>, transform_indices = @transform_1, window_bounds = array<i64: 8, 4>}, {transform_indices = @transform_2, window_bounds = array<i64: 1, 8, 64>}]} {
    %c0 = arith.constant 0 : index
    %c0_0 = arith.constant 0 : index
    %0 = vector.load %arg2[%c0, %c0_0] : memref<8x4xf32, #tpu.memory_space<vmem>>, vector<8x4xf32>
    %c0_1 = arith.constant 0 : index
    %c0_2 = arith.constant 0 : index
    %c0_3 = arith.constant 0 : index
    %1 = vector.load %arg1[%c0_1, %c0_2, %c0_3] : memref<1x4x64xf32, #tpu.memory_space<vmem>>, vector<1x4x64xf32>
    %2 = vector.shape_cast %1 : vector<1x4x64xf32> to vector<4x64xf32>
    %cst = arith.constant dense<0.000000e+00> : vector<8x64xf32>
    %3 = tpu.matmul %0, %2, %cst {dimension_numbers = #tpu.dot_dimension_numbers<[1], [0], [0], [1], [0, 0, 1, 1], [], []>} : vector<8x4xf32>, vector<4x64xf32>, vector<8x64xf32> -> vector<8x64xf32>
    %c0_4 = arith.constant 0 : index
    %c0_5 = arith.constant 0 : index
    %c0_6 = arith.constant 0 : index
    %4 = vector.load %arg3[%c0_4, %c0_5, %c0_6] : memref<1x8x64xf32, #tpu.memory_space<vmem>>, vector<1x8x64xf32>
    %5 = vector.shape_cast %4 : vector<1x8x64xf32> to vector<8x64xf32>
    %6 = vector.shape_cast %3 : vector<8x64xf32> to vector<1x8x64xf32>
    tpu.vector_store %arg3[%c0_4, %c0_5, %c0_6], %6 {strides = array<i32>} : memref<1x8x64xf32, #tpu.memory_space<vmem>>, vector<1x8x64xf32>,
    return
  }
  func.func @transform_0(%arg0: i32) -> (i32, i32, i32) {
    %c0_i32 = arith.constant 0 : i32
    %c0_i32_0 = arith.constant 0 : i32
    %c0_i32_1 = arith.constant 0 : i32
    return %arg0, %c0_i32, %c0_i32_0 : i32, i32, i32
  }
  func.func @transform_1(%arg0: i32) -> (i32, i32) {
    %c0_i32 = arith.constant 0 : i32
    %c0_i32_0 = arith.constant 0 : i32
    %c0_i32_1 = arith.constant 0 : i32
    return %c0_i32, %c0_i32_0 : i32, i32
  }
  func.func @transform_2(%arg0: i32) -> (i32, i32, i32) {
    %c0_i32 = arith.constant 0 : i32
    %c0_i32_0 = arith.constant 0 : i32
    %c0_i32_1 = arith.constant 0 : i32
    return %arg0, %c0_i32, %c0_i32_0 : i32, i32, i32
  }
}

module attributes {stable_mosaic.version = 11 : i64} {
  func.func @_upsample_concat_kernel(%arg0: i32, %arg1: i32, %arg2: memref<1x8x8x8xf32, #tpu.memory_space<vmem>>, %arg3: memref<8x8xf32, #tpu.memory_space<vmem>>, %arg4: memref<8x16xf32, #tpu.memory_space<vmem>>, %arg5: memref<1x8x8x16xf32, #tpu.memory_space<vmem>>, %arg6: memref<1x16x8x16xf32, #tpu.memory_space<vmem>>) attributes {dimension_semantics = [#tpu.dimension_semantics<parallel>, #tpu.dimension_semantics<parallel>], iteration_bounds = array<i64: 2, 2>, scalar_prefetch = 0 : i64, scratch_operands = 0 : i64, tpu.core_type = #tpu.core_type<tc>, window_params = [{transform_indices = @transform_0, window_bounds = array<i64: 1, 8, 8, 8>}, {transform_indices = @transform_1, window_bounds = array<i64: 8, 8>}, {pipeline_mode = #tpu.pipeline_mode<synchronous>, transform_indices = @transform_2, window_bounds = array<i64: 8, 16>}, {transform_indices = @transform_3, window_bounds = array<i64: 1, 8, 8, 16>}, {transform_indices = @transform_4, window_bounds = array<i64: 1, 16, 8, 16>}]} {
    %c0 = arith.constant 0 : index
    %c0_0 = arith.constant 0 : index
    %c0_1 = arith.constant 0 : index
    %c0_2 = arith.constant 0 : index
    %0 = vector.load %arg2[%c0, %c0_0, %c0_1, %c0_2] : memref<1x8x8x8xf32, #tpu.memory_space<vmem>>, vector<1x8x8x8xf32>
    %1 = vector.shape_cast %0 : vector<1x8x8x8xf32> to vector<8x8x8xf32>
    %c0_3 = arith.constant 0 : index
    %c0_4 = arith.constant 0 : index
    %2 = vector.load %arg3[%c0_3, %c0_4] : memref<8x8xf32, #tpu.memory_space<vmem>>, vector<8x8xf32>
    %3 = vector.shape_cast %2 : vector<8x8xf32> to vector<1x8x8xf32>
    %4 = vector.shape_cast %3 : vector<1x8x8xf32> to vector<1x8x8xf32>
    %5 = vector.broadcast %4 : vector<1x8x8xf32> to vector<8x8x8xf32>
    "tpu.trace_start"() <{level = 10 : i32, message = "cih,chl->cil"}> : () -> ()
    %cst = arith.constant dense<0.000000e+00> : vector<8x8x8xf32>
    %6 = tpu.matmul %5, %1, %cst {dimension_numbers = #tpu.dot_dimension_numbers<[2], [1], [1], [2], [0, 0, 0, 1, 1, 2], [0], [0]>} : vector<8x8x8xf32>, vector<8x8x8xf32>, vector<8x8x8xf32> -> vector<8x8x8xf32>
    "tpu.trace_stop"() : () -> ()
    %7 = vector.shape_cast %6 : vector<8x8x8xf32> to vector<64x8xf32>
    %c0_5 = arith.constant 0 : index
    %c0_6 = arith.constant 0 : index
    %8 = vector.load %arg4[%c0_5, %c0_6] : memref<8x16xf32, #tpu.memory_space<vmem>>, vector<8x16xf32>
    %cst_7 = arith.constant dense<0.000000e+00> : vector<64x16xf32>
    %9 = tpu.matmul %7, %8, %cst_7 {dimension_numbers = #tpu.dot_dimension_numbers<[1], [0], [0], [1], [0, 0, 1, 1], [], []>} : vector<64x8xf32>, vector<8x16xf32>, vector<64x16xf32> -> vector<64x16xf32>
    %10 = vector.shape_cast %9 : vector<64x16xf32> to vector<8x8x16xf32>
    %c0_8 = arith.constant 0 : index
    %c0_9 = arith.constant 0 : index
    %c0_10 = arith.constant 0 : index
    %c0_11 = arith.constant 0 : index
    %11 = vector.load %arg6[%c0_8, %c0_9, %c0_10, %c0_11] : memref<1x16x8x16xf32, #tpu.memory_space<vmem>>, vector<1x8x8x16xf32>
    %12 = vector.shape_cast %11 : vector<1x8x8x16xf32> to vector<8x8x16xf32>
    %13 = vector.shape_cast %10 : vector<8x8x16xf32> to vector<1x8x8x16xf32>
    tpu.vector_store %arg6[%c0_8, %c0_9, %c0_10, %c0_11], %13 {strides = array<i32>} : memref<1x16x8x16xf32, #tpu.memory_space<vmem>>, vector<1x8x8x16xf32>,
    %c0_12 = arith.constant 0 : index
    %c0_13 = arith.constant 0 : index
    %c0_14 = arith.constant 0 : index
    %c0_15 = arith.constant 0 : index
    %14 = vector.load %arg5[%c0_12, %c0_13, %c0_14, %c0_15] : memref<1x8x8x16xf32, #tpu.memory_space<vmem>>, vector<1x8x8x16xf32>
    %15 = vector.shape_cast %14 : vector<1x8x8x16xf32> to vector<8x8x16xf32>
    %c0_16 = arith.constant 0 : index
    %c8 = arith.constant 8 : index
    %c0_17 = arith.constant 0 : index
    %c0_18 = arith.constant 0 : index
    %16 = vector.load %arg6[%c0_16, %c8, %c0_17, %c0_18] : memref<1x16x8x16xf32, #tpu.memory_space<vmem>>, vector<1x8x8x16xf32>
    %17 = vector.shape_cast %16 : vector<1x8x8x16xf32> to vector<8x8x16xf32>
    %18 = vector.shape_cast %15 : vector<8x8x16xf32> to vector<1x8x8x16xf32>
    tpu.vector_store %arg6[%c0_16, %c8, %c0_17, %c0_18], %18 {strides = array<i32>} : memref<1x16x8x16xf32, #tpu.memory_space<vmem>>, vector<1x8x8x16xf32>,
    return
  }
  func.func @transform_0(%arg0: i32, %arg1: i32) -> (i32, i32, i32, i32) {
    %c0_i32 = arith.constant 0 : i32
    %c0_i32_0 = arith.constant 0 : i32
    %c0_i32_1 = arith.constant 0 : i32
    %c0_i32_2 = arith.constant 0 : i32
    return %arg0, %c0_i32, %c0_i32_0, %c0_i32_1 : i32, i32, i32, i32
  }
  func.func @transform_1(%arg0: i32, %arg1: i32) -> (i32, i32) {
    %c0_i32 = arith.constant 0 : i32
    %c0_i32_0 = arith.constant 0 : i32
    return %arg1, %c0_i32 : i32, i32
  }
  func.func @transform_2(%arg0: i32, %arg1: i32) -> (i32, i32) {
    %c0_i32 = arith.constant 0 : i32
    %c0_i32_0 = arith.constant 0 : i32
    %c0_i32_1 = arith.constant 0 : i32
    return %c0_i32, %c0_i32_0 : i32, i32
  }
  func.func @transform_3(%arg0: i32, %arg1: i32) -> (i32, i32, i32, i32) {
    %c0_i32 = arith.constant 0 : i32
    %c0_i32_0 = arith.constant 0 : i32
    %c0_i32_1 = arith.constant 0 : i32
    return %arg0, %c0_i32, %arg1, %c0_i32_0 : i32, i32, i32, i32
  }
  func.func @transform_4(%arg0: i32, %arg1: i32) -> (i32, i32, i32, i32) {
    %c0_i32 = arith.constant 0 : i32
    %c0_i32_0 = arith.constant 0 : i32
    %c0_i32_1 = arith.constant 0 : i32
    return %arg0, %c0_i32, %arg1, %c0_i32_0 : i32, i32, i32, i32
  }
}

</mosaic_0001>

<llo_original>
// kernel: multi_resolution_fuse.2
$region0: #{multi_resolution_fuse.2}
  #allocation0 [shape = 'u32[]', space=smem, size = 0x4, offset = 0x4, fixed_abs, tag = 'smem constant byte address 0x4 - core index']
  #allocation1 [shape = 'u32[72,128]{1,0:T(1,128)}', space=vmem, size = 0x9000, scoped, tag = 'internal scratch']
  %s0 = inlined_call_operand.vmem [shape: f32[2,4,64], index: 0, kind: input, shape index: {}]
  %s1 = inlined_call_operand.vmem [shape: f32[8,4], index: 1, kind: input, shape index: {}]
  %s2 = inlined_call_operand.vmem [shape: f32[2,8,64], index: 2, kind: output, shape index: {}]
  %s3 = sld [smem:[#allocation0]]
  $region41: #{multi_resolution_fuse.2} parent=0
    _
  %s5 = ssub.s32 1, %s3
  %s6 = scalar_select 0, %s5, %s3
  loop: start=0, step=1, limit=4
  $region2: #{multi_resolution_fuse.2} parent=0 // loop_pre_header
    _
  $region3: #{multi_resolution_fuse.2} parent=0 // loop_header
    %s8 = sphi 0, %s12
    %p9 = scmp.ge.s32.totalorder %s8, 4
    %s18 = sphi 0, %s20
    %s21 = sphi 0, %s18
    %s22 = sphi 0, %s21
    %s38 = sphi 0, %s22
    %s42 = sphi 0, %s42
    %s44 = sphi 0, %s42
    %s45 = sphi 0, %s44
    %s59 = sphi 0, %s45
    %s65 = sphi 0, %s67
    %s68 = sphi 0, %s65
    %s69 = sphi 0, %s68
    %s85 = sphi 0, %s69
  $region4: #{multi_resolution_fuse.2} parent=0 // loop_header_branch
    %11 = sbr.rel (%p9) target = $region8
  $region5: #{multi_resolution_fuse.2} parent=0 // loop_body
    %s13 = ssub.s32 %s8, 1
    %s14 = ssub.s32 %s8, 2
    %s15 = sadd.s32 %s8, 1
    %s16 = ssub.s32 %s8, %s15
    %p17 = scmp.eq.s32.totalorder %s16, 0
    %s19 = sadd.s32 %s18, 1
    %s20 = scalar_select %p17, %s18, %s19
    %p23 = pneg %p17
    %p24 = scmp.eq.s32.totalorder %s8, 1
    %p25 = por %p23, %p24
    %p26 = scmp.ne.s32.totalorder %s18, %s21
    %p27 = scmp.eq.s32.totalorder %s8, 0
    %p28 = por %p26, %p27
    %p29 = scmp.ne.s32.totalorder %s18, %s21
    %p30 = scmp.eq.s32.totalorder %s13, 1
    %p31 = por %p29, %p30
    %p32 = scmp.ne.s32.totalorder %s21, %s22
    %p33 = scmp.eq.s32.totalorder %s13, 0
    %p34 = por %p32, %p33
    %p35 = scmp.ne.s32.totalorder %s21, %s22
    %p36 = scmp.eq.s32.totalorder %s14, 1
    %p37 = por %p35, %p36
    %p39 = scmp.ne.s32.totalorder %s22, %s38
    %p40 = scmp.eq.s32.totalorder %s14, 0
    %p41 = por %p39, %p40
    %s43 = sadd.s32 %s42, 1
    %p46 = scmp.eq.s32.totalorder %s8, 1
    %p47 = scmp.ne.s32.totalorder %s42, %s44
    %p48 = scmp.eq.s32.totalorder %s8, 0
    %p49 = por %p47, %p48
    %p50 = scmp.ne.s32.totalorder %s42, %s44
    %p51 = scmp.eq.s32.totalorder %s13, 1
    %p52 = por %p50, %p51
    %p53 = scmp.ne.s32.totalorder %s44, %s45
    %p54 = scmp.eq.s32.totalorder %s13, 0
    %p55 = por %p53, %p54
    %p56 = scmp.ne.s32.totalorder %s44, %s45
    %p57 = scmp.eq.s32.totalorder %s14, 1
    %p58 = por %p56, %p57
    %p60 = scmp.ne.s32.totalorder %s45, %s59
    %p61 = scmp.eq.s32.totalorder %s14, 0
    %p62 = por %p60, %p61
    %s63 = ssub.s32 %s8, %s15
    %p64 = scmp.eq.s32.totalorder %s63, 0
    %s66 = sadd.s32 %s65, 1
    %s67 = scalar_select %p64, %s65, %s66
    %p70 = pneg %p64
    %p71 = scmp.eq.s32.totalorder %s8, 1
    %p72 = por %p70, %p71
    %p73 = scmp.ne.s32.totalorder %s65, %s68
    %p74 = scmp.eq.s32.totalorder %s8, 0
    %p75 = por %p73, %p74
    %p76 = scmp.ne.s32.totalorder %s65, %s68
    %p77 = scmp.eq.s32.totalorder %s13, 1
    %p78 = por %p76, %p77
    %p79 = scmp.ne.s32.totalorder %s68, %s69
    %p80 = scmp.eq.s32.totalorder %s13, 0
    %p81 = por %p79, %p80
    %p82 = scmp.ne.s32.totalorder %s68, %s69
    %p83 = scmp.eq.s32.totalorder %s14, 1
    %p84 = por %p82, %p83
    %p86 = scmp.ne.s32.totalorder %s69, %s85
    %p87 = scmp.eq.s32.totalorder %s14, 0
    %p88 = por %p86, %p87
    %p89 = scmp.le.s32.totalorder 1, %s8
    %p90 = scmp.lt.s32.totalorder %s8, 3
    %p91 = pnand %p89, %p90
    %p92 = pneg %p91
    // Predicated region
    $region9: #{multi_resolution_fuse.2} parent=5 // pred_check
      _
    $region10: #{multi_resolution_fuse.2} parent=5 // pred_check_branch
      %94 = sbr.rel (%p91) target = $region12
    $region11: #{multi_resolution_fuse.2} parent=5 // pred_region
      %s95 = ssub.s32 %s8, 1
      // Predicated region
      $region13: #{multi_resolution_fuse.2} parent=11 // pred_check
        %p96 = pneg %p55
      $region14: #{multi_resolution_fuse.2} parent=11 // pred_check_branch
        %98 = sbr.rel (%p96) target = $region16
      $region15: #{multi_resolution_fuse.2} parent=11 // pred_region
        _
      $region16: #{multi_resolution_fuse.2} parent=11 // pred_fallthru
        _
    $region12: #{multi_resolution_fuse.2} parent=5 // pred_fallthru
      _
    %p99 = scmp.lt.s32.totalorder %s8, 2
    // Predicated region
    $region17: #{multi_resolution_fuse.2} parent=5 // pred_check
      %p100 = pneg %p99
    $region18: #{multi_resolution_fuse.2} parent=5 // pred_check_branch
      %102 = sbr.rel (%p100) target = $region20
    $region19: #{multi_resolution_fuse.2} parent=5 // pred_region
      // Predicated region
      $region21: #{multi_resolution_fuse.2} parent=19 // pred_check
        %p103 = pneg %p28
      $region22: #{multi_resolution_fuse.2} parent=19 // pred_check_branch
        %105 = sbr.rel (%p103) target = $region24
      $region23: #{multi_resolution_fuse.2} parent=19 // pred_region
        %p106 = scmp.lt.s32.totalorder %s8, 1
        %s107 = scalar_select %p106, %s8, 1
        %s108 = smul.addr %s107, 4
        %s109 = scalar_lea.vmem %s0, %s108
      $region24: #{multi_resolution_fuse.2} parent=19 // pred_fallthru
        _
    $region20: #{multi_resolution_fuse.2} parent=5 // pred_fallthru
      _
    %p110 = scmp.le.s32.totalorder 1, %s8
    %p111 = scmp.lt.s32.totalorder %s8, 3
    %p112 = pnand %p110, %p111
    %p113 = pneg %p112
    // Predicated region
    $region25: #{multi_resolution_fuse.2} parent=5 // pred_check
      _
    $region26: #{multi_resolution_fuse.2} parent=5 // pred_check_branch
      %115 = sbr.rel (%p112) target = $region28
    $region27: #{multi_resolution_fuse.2} parent=5 // pred_region
      %s116 = ssub.s32 %s8, 1
      %p117 = scmp.lt.s32.totalorder %s13, 1
      %s118 = scalar_select %p117, %s13, 1
      %s119 = smul.addr %s118, 4
      %s120 = scalar_lea.vmem %s0, %s119
      %p121 = pneg %p34
      %p122 = pneg %p31
      %p123 = pneg %p55
      %p124 = pneg %p52
      %p125 = pneg %p81
      %p126 = pneg %p78
      %p127 = scmp.lt.s32.totalorder %s13, 1
      %s128 = scalar_select %p127, %s13, 1
      %s129 = smul.addr %s128, 8
      %s130 = scalar_lea.vmem %s2, %s129
      %p131 = scmp.lt.s32.totalorder %s13, 1
      %s132 = scalar_select %p131, %s13, 1
      %s133 = smul.addr %s132, 4
      %s134 = scalar_lea.vmem %s0, %s133
      %p135 = scmp.lt.s32.totalorder %s13, 1
      %s136 = scalar_select %p135, %s13, 1
      %s137 = smul.addr %s136, 8
      %s138 = scalar_lea.vmem %s2, %s137
      %v139 = vld [vmem:[%s1] sm:$0xff]
      %v140 = vld [vmem:[%s134] sm:$0xf]
      %vm141 = vcmask 31744
      %v143 = vsel %vm141, %v139, 0
      %vm145 = vcmask 1043456
      %v147 = vsel %vm145, %v140, 0
      %149 = vmatpush.msra.mxu0 0.0
      %150 = vmatpush.msra.mxu0 0.0
      %151 = vmatpush.msra.mxu0 0.0
      %152 = vmatpush.msra.mxu0 0.0
      %153 = vmatpush.msra.mxu0 0.0
      %154 = vmatpush.msra.mxu0 0.0
      %155 = vmatpush.msra.mxu0 0.0
      %156 = vmatpush.msra.mxu0 0.0
      %157 = vmatpush.msra.mxu0 0.0
      %158 = vmatpush.msra.mxu0 0.0
      %159 = vmatpush.msra.mxu0 0.0
      %160 = vmatpush.msra.mxu0 0.0
      %161 = vmatpush.msra.mxu0 0.0
      %162 = vmatpush.msra.mxu0 0.0
      %163 = vmatpush.msra.mxu0 0.0
      %164 = vmatpush.msra.mxu0 %v147
      %165 = vmatmul.f32.gmra.mxu0 %v143
      %v166 = vpop.f32.mrf.mxu0
      %v167 = vadd.f32 0.0, %v166
      %168 = vdwg.mxu0
      %vm169 = vcmask 523264
      %170 = vst.msk [vmem:[%s138] sm:$0xff] %vm169, %v167
      %p171 = scmp.lt.s32.totalorder %s13, 1
      %s172 = scalar_select %p171, %s13, 1
      %s173 = smul.addr %s172, 8
      %s174 = scalar_lea.vmem %s2, %s173
      // Predicated region
      $region29: #{multi_resolution_fuse.2} parent=27 // pred_check
        %p175 = pneg %p78
      $region30: #{multi_resolution_fuse.2} parent=27 // pred_check_branch
        %177 = sbr.rel (%p175) target = $region32
      $region31: #{multi_resolution_fuse.2} parent=27 // pred_region
        _
      $region32: #{multi_resolution_fuse.2} parent=27 // pred_fallthru
        _
    $region28: #{multi_resolution_fuse.2} parent=5 // pred_fallthru
      _
    %p178 = scmp.le.s32.totalorder 2, %s8
    // Predicated region
    $region33: #{multi_resolution_fuse.2} parent=5 // pred_check
      %p179 = pneg %p178
    $region34: #{multi_resolution_fuse.2} parent=5 // pred_check_branch
      %181 = sbr.rel (%p179) target = $region36
    $region35: #{multi_resolution_fuse.2} parent=5 // pred_region
      %s182 = ssub.s32 %s8, 2
      // Predicated region
      $region37: #{multi_resolution_fuse.2} parent=35 // pred_check
        %p183 = pneg %p84
      $region38: #{multi_resolution_fuse.2} parent=35 // pred_check_branch
        %185 = sbr.rel (%p183) target = $region40
      $region39: #{multi_resolution_fuse.2} parent=35 // pred_region
        %p186 = scmp.lt.s32.totalorder %s14, 1
        %s187 = scalar_select %p186, %s14, 1
        %s188 = smul.addr %s187, 8
        %s189 = scalar_lea.vmem %s2, %s188
      $region40: #{multi_resolution_fuse.2} parent=35 // pred_fallthru
        _
    $region36: #{multi_resolution_fuse.2} parent=5 // pred_fallthru
      _
  $region6: #{multi_resolution_fuse.2} parent=0 // loop_footer
    %s12 = sadd.s32 1, %s8
  $region7: #{multi_resolution_fuse.2} parent=0 // loop_footer_branch
    %7 = sbr.rel target = $region3
  $region8: #{multi_resolution_fuse.2} parent=0 // loop_exit
    _

// kernel: multi_resolution_fuse.3
$region0: #{multi_resolution_fuse.3}
  #allocation0 [shape = 'u32[]', space=smem, size = 0x4, offset = 0x4, fixed_abs, tag = 'smem constant byte address 0x4 - core index']
  #allocation1 [shape = 'u32[72,128]{1,0:T(1,128)}', space=vmem, size = 0x9000, scoped, tag = 'internal scratch']
  %s0 = inlined_call_operand.vmem [shape: f32[2,8,8,8], index: 0, kind: input, shape index: {}]
  %s1 = inlined_call_operand.vmem [shape: f32[16,8], index: 1, kind: input, shape index: {}]
  %s2 = inlined_call_operand.vmem [shape: f32[8,16], index: 2, kind: input, shape index: {}]
  %s3 = inlined_call_operand.hbm [shape: f32[2,8,16,16], index: 3, kind: input, shape index: {}]
  %s4 = inlined_call_operand.hbm [shape: f32[2,16,16,16], index: 4, kind: output, shape index: {}]
  %s5 = sld [smem:[#allocation0]]
  $region53: #{multi_resolution_fuse.3} parent=0
    _
  %s7 = ssub.s32 1, %s5
  %s8 = scalar_select 0, %s7, %s5
  $region1: #{multi_resolution_fuse.3} parent=0
    #allocation2 [shape = 'u8[65536]{0}', space=vmem, size = 0x10000, scoped, tag = 'input window, operand 3']
    #allocation3 [shape = 's32[2]{0}', space=sflag, size = 0x8, scoped, tag = 'scoped memory for multi_resolution_fuse.3']
    #allocation4 [shape = 's32[2]{0}', space=sflag, size = 0x8, scoped, tag = 'scoped memory for multi_resolution_fuse.3']
    #allocation5 [shape = 'u8[131072]{0}', space=vmem, size = 0x20000, scoped, tag = 'output window, operand 0']
    %9 = vsyncpa [#allocation3], 0
    %s10 = scalar_lea.sflag [#allocation3], 1
    %11 = vsyncpa %s10, 0
    %12 = vsyncpa [#allocation4], 0
    %s13 = scalar_lea.sflag [#allocation4], 1
    %14 = vsyncpa %s13, 0
    loop: start=0, step=1, limit=6
    $region2: #{multi_resolution_fuse.3} parent=1 // loop_pre_header
      _
    $region3: #{multi_resolution_fuse.3} parent=1 // loop_header
      %s16 = sphi 0, %s20
      %p17 = scmp.ge.s32.totalorder %s16, 6
      %s23 = sphi 0, %s35
      %s24 = sphi 0, %s31
      %s25 = sphi 0, %s23
      %s26 = sphi 0, %s24
      %s27 = sphi 0, %s25
      %s28 = sphi 0, %s26
      %s38 = sphi 0, %s40
      %s41 = sphi 0, %s38
      %s42 = sphi 0, %s41
      %s58 = sphi 0, %s42
      %s64 = sphi 0, %s66
      %s67 = sphi 0, %s64
      %s68 = sphi 0, %s67
      %s84 = sphi 0, %s68
      %s88 = sphi 0, %s88
      %s90 = sphi 0, %s88
      %s91 = sphi 0, %s90
      %s105 = sphi 0, %s91
      %s113 = sphi 0, %s115
      %s116 = sphi 0, %s113
      %s117 = sphi 0, %s116
      %s133 = sphi 0, %s117
      %s141 = sphi 0, %s143
      %s144 = sphi 0, %s141
      %s145 = sphi 0, %s144
      %s161 = sphi 0, %s145
    $region4: #{multi_resolution_fuse.3} parent=1 // loop_header_branch
      %19 = sbr.rel (%p17) target = $region8
    $region5: #{multi_resolution_fuse.3} parent=1 // loop_body
      %s21 = ssub.s32 %s16, 1
      %s22 = ssub.s32 %s16, 2
      %s29 = sadd.s32 1, %s24
      %p30 = scmp.ge.s32.totalorder %s29, 2
      %s31 = scalar_select %p30, 0, %s29
      %s32 = sadd.s32 1, %s23
      %s33 = scalar_select %p30, %s32, %s23
      %p34 = scmp.ge.s32.totalorder %s33, 2
      %s35 = scalar_select %p34, 0, %s33
      %s36 = ssub.s32 %s23, %s35
      %p37 = scmp.eq.s32.totalorder %s36, 0
      %s39 = sadd.s32 %s38, 1
      %s40 = scalar_select %p37, %s38, %s39
      %p43 = pneg %p37
      %p44 = scmp.eq.s32.totalorder %s16, 3
      %p45 = por %p43, %p44
      %p46 = scmp.ne.s32.totalorder %s38, %s41
      %p47 = scmp.eq.s32.totalorder %s16, 0
      %p48 = por %p46, %p47
      %p49 = scmp.ne.s32.totalorder %s38, %s41
      %p50 = scmp.eq.s32.totalorder %s21, 3
      %p51 = por %p49, %p50
      %p52 = scmp.ne.s32.totalorder %s41, %s42
      %p53 = scmp.eq.s32.totalorder %s21, 0
      %p54 = por %p52, %p53
      %p55 = scmp.ne.s32.totalorder %s41, %s42
      %p56 = scmp.eq.s32.totalorder %s22, 3
      %p57 = por %p55, %p56
      %p59 = scmp.ne.s32.totalorder %s42, %s58
      %p60 = scmp.eq.s32.totalorder %s22, 0
      %p61 = por %p59, %p60
      %s62 = ssub.s32 %s24, %s31
      %p63 = scmp.eq.s32.totalorder %s62, 0
      %s65 = sadd.s32 %s64, 1
      %s66 = scalar_select %p63, %s64, %s65
      %p69 = pneg %p63
      %p70 = scmp.eq.s32.totalorder %s16, 3
      %p71 = por %p69, %p70
      %p72 = scmp.ne.s32.totalorder %s64, %s67
      %p73 = scmp.eq.s32.totalorder %s16, 0
      %p74 = por %p72, %p73
      %p75 = scmp.ne.s32.totalorder %s64, %s67
      %p76 = scmp.eq.s32.totalorder %s21, 3
      %p77 = por %p75, %p76
      %p78 = scmp.ne.s32.totalorder %s67, %s68
      %p79 = scmp.eq.s32.totalorder %s21, 0
      %p80 = por %p78, %p79
      %p81 = scmp.ne.s32.totalorder %s67, %s68
      %p82 = scmp.eq.s32.totalorder %s22, 3
      %p83 = por %p81, %p82
      %p85 = scmp.ne.s32.totalorder %s68, %s84
      %p86 = scmp.eq.s32.totalorder %s22, 0
      %p87 = por %p85, %p86
      %s89 = sadd.s32 %s88, 1
      %p92 = scmp.eq.s32.totalorder %s16, 3
      %p93 = scmp.ne.s32.totalorder %s88, %s90
      %p94 = scmp.eq.s32.totalorder %s16, 0
      %p95 = por %p93, %p94
      %p96 = scmp.ne.s32.totalorder %s88, %s90
      %p97 = scmp.eq.s32.totalorder %s21, 3
      %p98 = por %p96, %p97
      %p99 = scmp.ne.s32.totalorder %s90, %s91
      %p100 = scmp.eq.s32.totalorder %s21, 0
      %p101 = por %p99, %p100
      %p102 = scmp.ne.s32.totalorder %s90, %s91
      %p103 = scmp.eq.s32.totalorder %s22, 3
      %p104 = por %p102, %p103
      %p106 = scmp.ne.s32.totalorder %s91, %s105
      %p107 = scmp.eq.s32.totalorder %s22, 0
      %p108 = por %p106, %p107
      %s109 = ssub.s32 %s23, %s35
      %s110 = ssub.s32 %s24, %s31
      %s111 = sor.u32 %s109, %s110
      %p112 = scmp.eq.s32.totalorder %s111, 0
      %s114 = sadd.s32 %s113, 1
      %s115 = scalar_select %p112, %s113, %s114
      %p118 = pneg %p112
      %p119 = scmp.eq.s32.totalorder %s16, 3
      %p120 = por %p118, %p119
      %p121 = scmp.ne.s32.totalorder %s113, %s116
      %p122 = scmp.eq.s32.totalorder %s16, 0
      %p123 = por %p121, %p122
      %p124 = scmp.ne.s32.totalorder %s113, %s116
      %p125 = scmp.eq.s32.totalorder %s21, 3
      %p126 = por %p124, %p125
      %p127 = scmp.ne.s32.totalorder %s116, %s117
      %p128 = scmp.eq.s32.totalorder %s21, 0
      %p129 = por %p127, %p128
      %p130 = scmp.ne.s32.totalorder %s116, %s117
      %p131 = scmp.eq.s32.totalorder %s22, 3
      %p132 = por %p130, %p131
      %p134 = scmp.ne.s32.totalorder %s117, %s133
      %p135 = scmp.eq.s32.totalorder %s22, 0
      %p136 = por %p134, %p135
      %s137 = ssub.s32 %s23, %s35
      %s138 = ssub.s32 %s24, %s31
      %s139 = sor.u32 %s137, %s138
      %p140 = scmp.eq.s32.totalorder %s139, 0
      %s142 = sadd.s32 %s141, 1
      %s143 = scalar_select %p140, %s141, %s142
      %p146 = pneg %p140
      %p147 = scmp.eq.s32.totalorder %s16, 3
      %p148 = por %p146, %p147
      %p149 = scmp.ne.s32.totalorder %s141, %s144
      %p150 = scmp.eq.s32.totalorder %s16, 0
      %p151 = por %p149, %p150
      %p152 = scmp.ne.s32.totalorder %s141, %s144
      %p153 = scmp.eq.s32.totalorder %s21, 3
      %p154 = por %p152, %p153
      %p155 = scmp.ne.s32.totalorder %s144, %s145
      %p156 = scmp.eq.s32.totalorder %s21, 0
      %p157 = por %p155, %p156
      %p158 = scmp.ne.s32.totalorder %s144, %s145
      %p159 = scmp.eq.s32.totalorder %s22, 3
      %p160 = por %p158, %p159
      %p162 = scmp.ne.s32.totalorder %s145, %s161
      %p163 = scmp.eq.s32.totalorder %s22, 0
      %p164 = por %p162, %p163
      %p165 = scmp.le.s32.totalorder 1, %s16
      %p166 = scmp.lt.s32.totalorder %s16, 5
      %p167 = pnand %p165, %p166
      %p168 = pneg %p167
      // Predicated region
      $region9: #{multi_resolution_fuse.3} parent=5 // pred_check
        _
      $region10: #{multi_resolution_fuse.3} parent=5 // pred_check_branch
        %170 = sbr.rel (%p167) target = $region12
      $region11: #{multi_resolution_fuse.3} parent=5 // pred_region
        %s171 = ssub.s32 %s16, 1
        // Predicated region
        $region13: #{multi_resolution_fuse.3} parent=11 // pred_check
          %p172 = pneg %p101
        $region14: #{multi_resolution_fuse.3} parent=11 // pred_check_branch
          %174 = sbr.rel (%p172) target = $region16
        $region15: #{multi_resolution_fuse.3} parent=11 // pred_region
          _
        $region16: #{multi_resolution_fuse.3} parent=11 // pred_fallthru
          _
      $region12: #{multi_resolution_fuse.3} parent=5 // pred_fallthru
        _
      %p175 = scmp.lt.s32.totalorder %s16, 4
      // Predicated region
      $region17: #{multi_resolution_fuse.3} parent=5 // pred_check
        %p176 = pneg %p175
      $region18: #{multi_resolution_fuse.3} parent=5 // pred_check_branch
        %178 = sbr.rel (%p176) target = $region20
      $region19: #{multi_resolution_fuse.3} parent=5 // pred_region
        // Predicated region
        $region21: #{multi_resolution_fuse.3} parent=19 // pred_check
          %p179 = pneg %p48
        $region22: #{multi_resolution_fuse.3} parent=19 // pred_check_branch
          %181 = sbr.rel (%p179) target = $region24
        $region23: #{multi_resolution_fuse.3} parent=19 // pred_region
          %p182 = scmp.lt.s32.totalorder %s23, 1
          %s183 = scalar_select %p182, %s23, 1
          %s184 = smul.addr %s183, 8
          %s185 = smul.addr %s184, 8
          %s186 = scalar_lea.vmem %s0, %s185
        $region24: #{multi_resolution_fuse.3} parent=19 // pred_fallthru
          _
        // Predicated region
        $region25: #{multi_resolution_fuse.3} parent=19 // pred_check
          %p187 = pneg %p74
        $region26: #{multi_resolution_fuse.3} parent=19 // pred_check_branch
          %189 = sbr.rel (%p187) target = $region28
        $region27: #{multi_resolution_fuse.3} parent=19 // pred_region
          %p190 = scmp.lt.s32.totalorder %s24, 1
          %s191 = scalar_select %p190, %s24, 1
          %s192 = smul.addr %s191, 8
          %s193 = scalar_lea.vmem %s1, %s192
        $region28: #{multi_resolution_fuse.3} parent=19 // pred_fallthru
          _
        // Predicated region
        $region29: #{multi_resolution_fuse.3} parent=19 // pred_check
          %p194 = pneg %p123
        $region30: #{multi_resolution_fuse.3} parent=19 // pred_check_branch
          %196 = sbr.rel (%p194) target = $region32
        $region31: #{multi_resolution_fuse.3} parent=19 // pred_region
          %s197 = sand.u32 %s113, 1
          %s198 = scalar_lea.sflag [#allocation3], %s197
          %s199 = sand.u32 %s113, 1
          %s200 = smul.addr %s199, 64
          %s201 = scalar_lea.vmem [#allocation2], %s200
          %203 = vsyncadd %s198, 0
          %s204 = smul.addr %s23, 16
          %s205 = sadd.s32 %s24, %s204
          %s206 = smul.addr %s205, 8
          %s207 = scalar_lea.hbm %s3, %s206
          %s208 = sshll.u32 %s207, 4
          %s209 = int_to_ptr.hbm [resolvable:$true] %s208
          %s210 = sshll.u32 %s201, 4
          %s211 = int_to_ptr.vmem [resolvable:$true] %s210
          %216 = dma.hbm_to_vmem [thread:$0]  %s209, 1024, %s211, %s198, 256, 128, 8
        $region32: #{multi_resolution_fuse.3} parent=19 // pred_fallthru
          _
      $region20: #{multi_resolution_fuse.3} parent=5 // pred_fallthru
        _
      %p217 = scmp.le.s32.totalorder 1, %s16
      %p218 = scmp.lt.s32.totalorder %s16, 5
      %p219 = pnand %p217, %p218
      %p220 = pneg %p219
      // Predicated region
      $region33: #{multi_resolution_fuse.3} parent=5 // pred_check
        _
      $region34: #{multi_resolution_fuse.3} parent=5 // pred_check_branch
        %222 = sbr.rel (%p219) target = $region36
      $region35: #{multi_resolution_fuse.3} parent=5 // pred_region
        %s223 = ssub.s32 %s16, 1
        %s224 = sand.u32 %s116, 1
        %s225 = scalar_lea.sflag [#allocation3], %s224
        %s226 = sand.u32 %s116, 1
        %s227 = smul.addr %s226, 64
        %s228 = scalar_lea.vmem [#allocation2], %s227
        // Predicated region
        $region37: #{multi_resolution_fuse.3} parent=35 // pred_check
          %p229 = pneg %p129
        $region38: #{multi_resolution_fuse.3} parent=35 // pred_check_branch
          %231 = sbr.rel (%p229) target = $region40
        $region39: #{multi_resolution_fuse.3} parent=35 // pred_region
          %233 = dma.done %s225, 1024
        $region40: #{multi_resolution_fuse.3} parent=35 // pred_fallthru
          _
        %p234 = scmp.lt.s32.totalorder %s25, 1
        %s235 = scalar_select %p234, %s25, 1
        %s236 = smul.addr %s235, 8
        %s237 = smul.addr %s236, 8
        %s238 = scalar_lea.vmem %s0, %s237
        %p239 = pneg %p54
        %p240 = pneg %p51
        %p241 = scmp.lt.s32.totalorder %s26, 1
        %s242 = scalar_select %p241, %s26, 1
        %s243 = smul.addr %s242, 8
        %s244 = scalar_lea.vmem %s1, %s243
        %p245 = pneg %p80
        %p246 = pneg %p77
        %p247 = pneg %p101
        %p248 = pneg %p98
        %s249 = sand.u32 %s116, 1
        %s250 = scalar_lea.sflag [#allocation3], %s249
        %s251 = sand.u32 %s116, 1
        %s252 = smul.addr %s251, 64
        %s253 = scalar_lea.vmem [#allocation2], %s252
        %p254 = pneg %p129
        %p255 = pneg %p126
        %p256 = pneg %p157
        %p257 = pneg %p154
        %s258 = sand.u32 %s144, 1
        %s259 = scalar_lea.sflag [#allocation4], %s258
        %s260 = sand.u32 %s144, 1
        %s261 = smul.addr %s260, 128
        %s262 = scalar_lea.vmem [#allocation5], %s261
        %p263 = scmp.lt.s32.totalorder %s25, 1
        %s264 = scalar_select %p263, %s25, 1
        %s265 = smul.addr %s264, 8
        %s266 = smul.addr %s265, 8
        %s267 = scalar_lea.vmem %s0, %s266
        %p268 = scmp.lt.s32.totalorder %s26, 1
        %s269 = scalar_select %p268, %s26, 1
        %s270 = smul.addr %s269, 8
        %s271 = scalar_lea.vmem %s1, %s270
        %v272 = vld [vmem:[%s267] sm:$0xff]
        %v273 = vld [vmem:[%s267 + $0x8] sm:$0xff]
        %v274 = vld [vmem:[%s267 + $0x10] sm:$0xff]
        %v275 = vld [vmem:[%s267 + $0x18] sm:$0xff]
        %v276 = vld [vmem:[%s267 + $0x20] sm:$0xff]
        %v277 = vld [vmem:[%s267 + $0x28] sm:$0xff]
        %v278 = vld [vmem:[%s267 + $0x30] sm:$0xff]
        %v279 = vld [vmem:[%s267 + $0x38] sm:$0xff]
        %v280 = vld [vmem:[%s271] sm:$0xff]
        %vm281 = vcmask 64512
        %v283 = vsel %vm281, %v280, 0
        %285 = vmatpush.msra.mxu0 0.0
        %286 = vmatpush.msra.mxu0 0.0
        %287 = vmatpush.msra.mxu0 0.0
        %288 = vmatpush.msra.mxu0 0.0
        %289 = vmatpush.msra.mxu0 0.0
        %290 = vmatpush.msra.mxu0 0.0
        %291 = vmatpush.msra.mxu0 0.0
        %292 = vmatpush.msra.mxu0 0.0
        %293 = vmatpush.msra.mxu0 0.0
        %294 = vmatpush.msra.mxu0 0.0
        %295 = vmatpush.msra.mxu0 0.0
        %296 = vmatpush.msra.mxu0 0.0
        %297 = vmatpush.msra.mxu0 0.0
        %298 = vmatpush.msra.mxu0 0.0
        %299 = vmatpush.msra.mxu0 0.0
        %300 = vmatpush.msra.mxu0 %v272
        %301 = vmatmul.f32.gmra.mxu0 %v283
        %v302 = vpop.f32.mrf.mxu0
        %v303 = vadd.f32 0.0, %v302
        %304 = vdwg.mxu0
        %305 = vmatpush.msra.mxu0 0.0
        %306 = vmatpush.msra.mxu0 0.0
        %307 = vmatpush.msra.mxu0 0.0
        %308 = vmatpush.msra.mxu0 0.0
        %309 = vmatpush.msra.mxu0 0.0
        %310 = vmatpush.msra.mxu0 0.0
        %311 = vmatpush.msra.mxu0 0.0
        %312 = vmatpush.msra.mxu0 0.0
        %313 = vmatpush.msra.mxu0 0.0
        %314 = vmatpush.msra.mxu0 0.0
        %315 = vmatpush.msra.mxu0 0.0
        %316 = vmatpush.msra.mxu0 0.0
        %317 = vmatpush.msra.mxu0 0.0
        %318 = vmatpush.msra.mxu0 0.0
        %319 = vmatpush.msra.mxu0 0.0
        %320 = vmatpush.msra.mxu0 %v273
        %321 = vmatmul.f32.gmra.mxu0 %v283
        %v322 = vpop.f32.mrf.mxu0
        %v323 = vadd.f32 0.0, %v322
        %324 = vdwg.mxu0
        %325 = vmatpush.msra.mxu0 0.0
        %326 = vmatpush.msra.mxu0 0.0
        %327 = vmatpush.msra.mxu0 0.0
        %328 = vmatpush.msra.mxu0 0.0
        %329 = vmatpush.msra.mxu0 0.0
        %330 = vmatpush.msra.mxu0 0.0
        %331 = vmatpush.msra.mxu0 0.0
        %332 = vmatpush.msra.mxu0 0.0
        %333 = vmatpush.msra.mxu0 0.0
        %334 = vmatpush.msra.mxu0 0.0
        %335 = vmatpush.msra.mxu0 0.0
        %336 = vmatpush.msra.mxu0 0.0
        %337 = vmatpush.msra.mxu0 0.0
        %338 = vmatpush.msra.mxu0 0.0
        %339 = vmatpush.msra.mxu0 0.0
        %340 = vmatpush.msra.mxu0 %v274
        %341 = vmatmul.f32.gmra.mxu0 %v283
        %v342 = vpop.f32.mrf.mxu0
        %v343 = vadd.f32 0.0, %v342
        %344 = vdwg.mxu0
        %345 = vmatpush.msra.mxu0 0.0
        %346 = vmatpush.msra.mxu0 0.0
        %347 = vmatpush.msra.mxu0 0.0
        %348 = vmatpush.msra.mxu0 0.0
        %349 = vmatpush.msra.mxu0 0.0
        %350 = vmatpush.msra.mxu0 0.0
        %351 = vmatpush.msra.mxu0 0.0
        %352 = vmatpush.msra.mxu0 0.0
        %353 = vmatpush.msra.mxu0 0.0
        %354 = vmatpush.msra.mxu0 0.0
        %355 = vmatpush.msra.mxu0 0.0
        %356 = vmatpush.msra.mxu0 0.0
        %357 = vmatpush.msra.mxu0 0.0
        %358 = vmatpush.msra.mxu0 0.0
        %359 = vmatpush.msra.mxu0 0.0
        %360 = vmatpush.msra.mxu0 %v275
        %361 = vmatmul.f32.gmra.mxu0 %v283
        %v362 = vpop.f32.mrf.mxu0
        %v363 = vadd.f32 0.0, %v362
        %364 = vdwg.mxu0
        %365 = vmatpush.msra.mxu0 0.0
        %366 = vmatpush.msra.mxu0 0.0
        %367 = vmatpush.msra.mxu0 0.0
        %368 = vmatpush.msra.mxu0 0.0
        %369 = vmatpush.msra.mxu0 0.0
        %370 = vmatpush.msra.mxu0 0.0
        %371 = vmatpush.msra.mxu0 0.0
        %372 = vmatpush.msra.mxu0 0.0
        %373 = vmatpush.msra.mxu0 0.0
        %374 = vmatpush.msra.mxu0 0.0
        %375 = vmatpush.msra.mxu0 0.0
        %376 = vmatpush.msra.mxu0 0.0
        %377 = vmatpush.msra.mxu0 0.0
        %378 = vmatpush.msra.mxu0 0.0
        %379 = vmatpush.msra.mxu0 0.0
        %380 = vmatpush.msra.mxu0 %v276
        %381 = vmatmul.f32.gmra.mxu0 %v283
        %v382 = vpop.f32.mrf.mxu0
        %v383 = vadd.f32 0.0, %v382
        %384 = vdwg.mxu0
        %385 = vmatpush.msra.mxu0 0.0
        %386 = vmatpush.msra.mxu0 0.0
        %387 = vmatpush.msra.mxu0 0.0
        %388 = vmatpush.msra.mxu0 0.0
        %389 = vmatpush.msra.mxu0 0.0
        %390 = vmatpush.msra.mxu0 0.0
        %391 = vmatpush.msra.mxu0 0.0
        %392 = vmatpush.msra.mxu0 0.0
        %393 = vmatpush.msra.mxu0 0.0
        %394 = vmatpush.msra.mxu0 0.0
        %395 = vmatpush.msra.mxu0 0.0
        %396 = vmatpush.msra.mxu0 0.0
        %397 = vmatpush.msra.mxu0 0.0
        %398 = vmatpush.msra.mxu0 0.0
        %399 = vmatpush.msra.mxu0 0.0
        %400 = vmatpush.msra.mxu0 %v277
        %401 = vmatmul.f32.gmra.mxu0 %v283
        %v402 = vpop.f32.mrf.mxu0
        %v403 = vadd.f32 0.0, %v402
        %404 = vdwg.mxu0
        %405 = vmatpush.msra.mxu0 0.0
        %406 = vmatpush.msra.mxu0 0.0
        %407 = vmatpush.msra.mxu0 0.0
        %408 = vmatpush.msra.mxu0 0.0
        %409 = vmatpush.msra.mxu0 0.0
        %410 = vmatpush.msra.mxu0 0.0
        %411 = vmatpush.msra.mxu0 0.0
        %412 = vmatpush.msra.mxu0 0.0
        %413 = vmatpush.msra.mxu0 0.0
        %414 = vmatpush.msra.mxu0 0.0
        %415 = vmatpush.msra.mxu0 0.0
        %416 = vmatpush.msra.mxu0 0.0
        %417 = vmatpush.msra.mxu0 0.0
        %418 = vmatpush.msra.mxu0 0.0
        %419 = vmatpush.msra.mxu0 0.0
        %420 = vmatpush.msra.mxu0 %v278
        %421 = vmatmul.f32.gmra.mxu0 %v283
        %v422 = vpop.f32.mrf.mxu0
        %v423 = vadd.f32 0.0, %v422
        %424 = vdwg.mxu0
        %425 = vmatpush.msra.mxu0 0.0
        %426 = vmatpush.msra.mxu0 0.0
        %427 = vmatpush.msra.mxu0 0.0
        %428 = vmatpush.msra.mxu0 0.0
        %429 = vmatpush.msra.mxu0 0.0
        %430 = vmatpush.msra.mxu0 0.0
        %431 = vmatpush.msra.mxu0 0.0
        %432 = vmatpush.msra.mxu0 0.0
        %433 = vmatpush.msra.mxu0 0.0
        %434 = vmatpush.msra.mxu0 0.0
        %435 = vmatpush.msra.mxu0 0.0
        %436 = vmatpush.msra.mxu0 0.0
        %437 = vmatpush.msra.mxu0 0.0
        %438 = vmatpush.msra.mxu0 0.0
        %439 = vmatpush.msra.mxu0 0.0
        %440 = vmatpush.msra.mxu0 %v279
        %441 = vmatmul.f32.gmra.mxu0 %v283
        %v442 = vpop.f32.mrf.mxu0
        %v443 = vadd.f32 0.0, %v442
        %444 = vdwg.mxu0
        %v445 = vld [vmem:[%s2] sm:$0xff]
        %v447 = vsel %vm281, %v303, 0
        %v450 = vsel %vm281, %v323, 0
        %v453 = vsel %vm281, %v343, 0
        %v456 = vsel %vm281, %v363, 0
        %v459 = vsel %vm281, %v383, 0
        %v462 = vsel %vm281, %v403, 0
        %v465 = vsel %vm281, %v423, 0
        %v468 = vsel %vm281, %v443, 0
        %470 = vmatpush.msra.mxu0 0.0
        %471 = vmatpush.msra.mxu0 0.0
        %472 = vmatpush.msra.mxu0 0.0
        %473 = vmatpush.msra.mxu0 0.0
        %474 = vmatpush.msra.mxu0 0.0
        %475 = vmatpush.msra.mxu0 0.0
        %476 = vmatpush.msra.mxu0 0.0
        %477 = vmatpush.msra.mxu0 0.0
        %478 = vmatpush.msra.mxu0 0.0
        %479 = vmatpush.msra.mxu0 0.0
        %480 = vmatpush.msra.mxu0 0.0
        %481 = vmatpush.msra.mxu0 0.0
        %482 = vmatpush.msra.mxu0 0.0
        %483 = vmatpush.msra.mxu0 0.0
        %484 = vmatpush.msra.mxu0 0.0
        %485 = vmatpush.msra.mxu0 %v445
        %486 = vmatmul.f32.gmra.mxu0 %v447
        %v487 = vpop.f32.mrf.mxu0
        %v488 = vadd.f32 0.0, %v487
        %489 = vmatmul.f32.gmra.mxu0 %v450
        %v490 = vpop.f32.mrf.mxu0
        %v491 = vadd.f32 0.0, %v490
        %492 = vmatmul.f32.gmra.mxu0 %v453
        %v493 = vpop.f32.mrf.mxu0
        %v494 = vadd.f32 0.0, %v493
        %495 = vmatmul.f32.gmra.mxu0 %v456
        %v496 = vpop.f32.mrf.mxu0
        %v497 = vadd.f32 0.0, %v496
        %498 = vmatmul.f32.gmra.mxu0 %v459
        %v499 = vpop.f32.mrf.mxu0
        %v500 = vadd.f32 0.0, %v499
        %501 = vmatmul.f32.gmra.mxu0 %v462
        %v502 = vpop.f32.mrf.mxu0
        %v503 = vadd.f32 0.0, %v502
        %504 = vmatmul.f32.gmra.mxu0 %v465
        %v505 = vpop.f32.mrf.mxu0
        %v506 = vadd.f32 0.0, %v505
        %507 = vmatmul.f32.gmra.mxu0 %v468
        %v508 = vpop.f32.mrf.mxu0
        %v509 = vadd.f32 0.0, %v508
        %510 = vdwg.mxu0
        %vm511 = vcmask 130048
        %512 = vst.msk [vmem:[%s262] sm:$0xff] %vm511, %v488
        %513 = vst.msk [vmem:[%s262 + $0x8] sm:$0xff] %vm511, %v491
        %514 = vst.msk [vmem:[%s262 + $0x10] sm:$0xff] %vm511, %v494
        %515 = vst.msk [vmem:[%s262 + $0x18] sm:$0xff] %vm511, %v497
        %516 = vst.msk [vmem:[%s262 + $0x20] sm:$0xff] %vm511, %v500
        %517 = vst.msk [vmem:[%s262 + $0x28] sm:$0xff] %vm511, %v503
        %518 = vst.msk [vmem:[%s262 + $0x30] sm:$0xff] %vm511, %v506
        %519 = vst.msk [vmem:[%s262 + $0x38] sm:$0xff] %vm511, %v509
        %v520 = vld [vmem:[%s228] sm:$0xff]
        %v521 = vld [vmem:[%s228 + $0x8] sm:$0xff]
        %v522 = vld [vmem:[%s228 + $0x10] sm:$0xff]
        %v523 = vld [vmem:[%s228 + $0x18] sm:$0xff]
        %v524 = vld [vmem:[%s228 + $0x20] sm:$0xff]
        %v525 = vld [vmem:[%s228 + $0x28] sm:$0xff]
        %v526 = vld [vmem:[%s228 + $0x30] sm:$0xff]
        %v527 = vld [vmem:[%s228 + $0x38] sm:$0xff]
        %s528 = scalar_lea.vmem %s262, 64 [#allocation5]
        %529 = vst.msk [vmem:[%s528] sm:$0xff] %vm511, %v520
        %530 = vst.msk [vmem:[%s528 + $0x8] sm:$0xff] %vm511, %v521
        %531 = vst.msk [vmem:[%s528 + $0x10] sm:$0xff] %vm511, %v522
        %532 = vst.msk [vmem:[%s528 + $0x18] sm:$0xff] %vm511, %v523
        %533 = vst.msk [vmem:[%s528 + $0x20] sm:$0xff] %vm511, %v524
        %534 = vst.msk [vmem:[%s528 + $0x28] sm:$0xff] %vm511, %v525
        %535 = vst.msk [vmem:[%s528 + $0x30] sm:$0xff] %vm511, %v526
        %536 = vst.msk [vmem:[%s528 + $0x38] sm:$0xff] %vm511, %v527
        %s537 = sand.u32 %s144, 1
        %s538 = scalar_lea.sflag [#allocation4], %s537
        %s539 = sand.u32 %s144, 1
        %s540 = smul.addr %s539, 128
        %s541 = scalar_lea.vmem [#allocation5], %s540
        // Predicated region
        $region41: #{multi_resolution_fuse.3} parent=35 // pred_check
          %p542 = pneg %p154
        $region42: #{multi_resolution_fuse.3} parent=35 // pred_check_branch
          %544 = sbr.rel (%p542) target = $region44
        $region43: #{multi_resolution_fuse.3} parent=35 // pred_region
          %546 = vsyncadd %s538, 0
          %s547 = smul.addr %s25, 32
          %s548 = sadd.s32 %s26, %s547
          %s549 = smul.addr %s548, 8
          %s550 = scalar_lea.hbm %s4, %s549
          %s551 = sshll.u32 %s541, 4
          %s552 = int_to_ptr.vmem [resolvable:$true] %s551
          %s553 = sshll.u32 %s550, 4
          %s554 = int_to_ptr.hbm [resolvable:$true] %s553
          %559 = dma.vmem_to_hbm [thread:$0]  %s552, 2048, %s554, %s538, 128, 256, 8
        $region44: #{multi_resolution_fuse.3} parent=35 // pred_fallthru
          _
      $region36: #{multi_resolution_fuse.3} parent=5 // pred_fallthru
        _
      %p560 = scmp.le.s32.totalorder 2, %s16
      // Predicated region
      $region45: #{multi_resolution_fuse.3} parent=5 // pred_check
        %p561 = pneg %p560
      $region46: #{multi_resolution_fuse.3} parent=5 // pred_check_branch
        %563 = sbr.rel (%p561) target = $region48
      $region47: #{multi_resolution_fuse.3} parent=5 // pred_region
        %s564 = ssub.s32 %s16, 2
        // Predicated region
        $region49: #{multi_resolution_fuse.3} parent=47 // pred_check
          %p565 = pneg %p160
        $region50: #{multi_resolution_fuse.3} parent=47 // pred_check_branch
          %567 = sbr.rel (%p565) target = $region52
        $region51: #{multi_resolution_fuse.3} parent=47 // pred_region
          %s568 = sand.u32 %s145, 1
          %s569 = scalar_lea.sflag [#allocation4], %s568
          %s570 = sand.u32 %s145, 1
          %s571 = smul.addr %s570, 128
          %s572 = scalar_lea.vmem [#allocation5], %s571
          %574 = dma.done %s569, 2048
        $region52: #{multi_resolution_fuse.3} parent=47 // pred_fallthru
          _
      $region48: #{multi_resolution_fuse.3} parent=5 // pred_fallthru
        _
    $region6: #{multi_resolution_fuse.3} parent=1 // loop_footer
      %s20 = sadd.s32 1, %s16
    $region7: #{multi_resolution_fuse.3} parent=1 // loop_footer_branch
      %15 = sbr.rel target = $region3
    $region8: #{multi_resolution_fuse.3} parent=1 // loop_exit
      _
    %575 = vsyncpa [#allocation3], 1
    %s576 = scalar_lea.sflag [#allocation3], 1
    %577 = vsyncpa %s576, 1
    %578 = vsyncpa [#allocation4], 1
    %s579 = scalar_lea.sflag [#allocation4], 1
    %580 = vsyncpa %s579, 1

</llo_original>
